<compile_context>
chip_gen: v7x
topology: tpu7x:2x2x1
jax: 0.10.0
libtpu: 0.0.40
codegen_flags: <defaults>
</compile_context>

<pallas_src>
import jax
import jax.numpy as jnp
from jax.experimental import pallas as pl
from jax.experimental.pallas import tpu as pltpu

LANE = 128          # lane width
SUB = 8             # sublane granularity (f32)
MAX_TILE_ROWS = 512 # rows of 128 lanes per channel per grid step


def dp_end_kernel(w_ref, b_ref, ua_ref, fi_ref, o_ref):
    # w_ref: (3, 3) f32 in SMEM, already pre-scaled by 0.5
    # b_ref: (3,)   f32 in SMEM, already bias - w.sum(axis=1)
    # ua_ref / fi_ref / o_ref: (C=3, TM, 128) dense per-channel planes in VMEM
    p0 = (ua_ref[0] + 1.0) * (fi_ref[0] + 1.0)
    p1 = (ua_ref[1] + 1.0) * (fi_ref[1] + 1.0)
    p2 = (ua_ref[2] + 1.0) * (fi_ref[2] + 1.0)
    for c in range(3):  # static unroll: 9 scalar*vector FMAs, no MXU
        out_c = (w_ref[c, 0] * p0
                 + w_ref[c, 1] * p1
                 + w_ref[c, 2] * p2
                 + b_ref[c])
        o_ref[c] = out_c.astype(o_ref.dtype)


def dp_end_forward(ua, fi, w, b):
    """ua, fi: (N, 3, H, W) float32; w: (3, 3); b: (3,). Returns (N, 3, H, W)."""
    N, C, H, W = ua.shape
    assert C == 3, "DP_end uses Conv2d(3, 3, 1)"
    HW = H * W

    # Fold the affine prologue constants into the conv parameters:
    #   out_c = sum_k w[c,k] * (0.5*(ua+1)(fi+1) - 1) + b[c]
    #         = sum_k (0.5*w[c,k]) * (ua+1)(fi+1) + (b[c] - sum_k w[c,k])
    w_eff = (0.5 * w).astype(jnp.float32)
    b_eff = (b - jnp.sum(w, axis=1)).astype(jnp.float32)

    # Lane-dense spatial layout: (N, C, ROWS, 128), padding HW up to 128.
    rows = -(-HW // LANE)
    pad_hw = rows * LANE
    ua2 = ua.reshape(N, C, HW)
    fi2 = fi.reshape(N, C, HW)
    if pad_hw != HW:
        pad = ((0, 0), (0, 0), (0, pad_hw - HW))
        ua2 = jnp.pad(ua2, pad)
        fi2 = jnp.pad(fi2, pad)
    ua2 = ua2.reshape(N, C, rows, LANE)
    fi2 = fi2.reshape(N, C, rows, LANE)

    # Spatial tile: multiple of 8 sublanes when possible, else full extent
    # (full-extent second-to-last dims are always legal).
    if rows % SUB == 0:
        tm = min(rows, MAX_TILE_ROWS)
        while rows % tm:
            tm -= SUB
    else:
        tm = rows
    grid = (N, rows // tm)

    data_spec = pl.BlockSpec((None, C, tm, LANE), lambda n, r: (n, 0, r, 0))
    smem_spec = pl.BlockSpec(memory_space=pltpu.MemorySpace.SMEM)

    out = pl.pallas_call(
        dp_end_kernel,
        out_shape=jax.ShapeDtypeStruct((N, C, rows, LANE), ua.dtype),
        grid_spec=pltpu.PrefetchScalarGridSpec(
            num_scalar_prefetch=0,
            grid=grid,
            in_specs=[smem_spec, smem_spec, data_spec, data_spec],
            out_specs=data_spec,
        ),
        compiler_params=pltpu.CompilerParams(
            dimension_semantics=("parallel", "parallel"),
        ),
    )(w_eff, b_eff, ua2, fi2)

    out = out.reshape(N, C, pad_hw)[:, :, :HW].reshape(N, C, H, W)
    return out


def dp_end_reference(ua, fi, w, b):
    p1 = (ua + 1.0) * (fi + 1.0) * 0.5 - 1.0
    out = jnp.einsum("oc,nchw->nohw", w, p1) + b[None, :, None, None]
    return out


if __name__ == "__main__":
    key = jax.random.PRNGKey(0)
    k_ua, k_fi, k_w, k_b = jax.random.split(key, 4)

    N, C, H, W = 2, 3, 16, 16  # Conv2d(3, 3, 1) fixes C=3
    ua = jax.random.normal(k_ua, (N, C, H, W), dtype=jnp.float32)
    fi = jax.random.normal(k_fi, (N, C, H, W), dtype=jnp.float32)

    # Synthetic 1x1-conv parameters: weight (3,3,1,1) -> (3,3), bias (3,)
    w = jax.random.normal(k_w, (C, C), dtype=jnp.float32) * 0.1
    b = jax.random.normal(k_b, (C,), dtype=jnp.float32) * 0.1

    out = dp_end_forward(ua, fi, w, b)
    jax.block_until_ready(out)

    ref = dp_end_reference(ua, fi, w, b)
    assert out.shape == (N, C, H, W)
    assert jnp.allclose(out, ref, atol=1e-5, rtol=1e-5), "mismatch vs reference"

    print("KERNEL_OK")
</pallas_src>

<mosaic_0001>
module attributes {stable_mosaic.version = 11 : i64} {
  func.func @dp_end_kernel(%arg0: i32, %arg1: i32, %arg2: memref<3x3xf32, #tpu.memory_space<smem>>, %arg3: memref<3xf32, #tpu.memory_space<smem>>, %arg4: memref<1x3x2x128xf32, #tpu.memory_space<vmem>>, %arg5: memref<1x3x2x128xf32, #tpu.memory_space<vmem>>, %arg6: memref<1x3x2x128xf32, #tpu.memory_space<vmem>>) attributes {dimension_semantics = [#tpu.dimension_semantics<parallel>, #tpu.dimension_semantics<parallel>], iteration_bounds = array<i64: 2, 1>, scalar_prefetch = 0 : i64, scratch_operands = 0 : i64, tpu.core_type = #tpu.core_type<tc>, window_params = [{transform_indices = @transform_0, window_bounds = array<i64: 3, 3>}, {transform_indices = @transform_1, window_bounds = array<i64: 3>}, {transform_indices = @transform_2, window_bounds = array<i64: 1, 3, 2, 128>}, {transform_indices = @transform_3, window_bounds = array<i64: 1, 3, 2, 128>}, {transform_indices = @transform_4, window_bounds = array<i64: 1, 3, 2, 128>}]} {
    %c0 = arith.constant 0 : index
    %c0_0 = arith.constant 0 : index
    %c0_1 = arith.constant 0 : index
    %c0_2 = arith.constant 0 : index
    %0 = vector.load %arg4[%c0, %c0_0, %c0_1, %c0_2] : memref<1x3x2x128xf32, #tpu.memory_space<vmem>>, vector<1x1x2x128xf32>
    %1 = vector.shape_cast %0 : vector<1x1x2x128xf32> to vector<2x128xf32>
    %cst = arith.constant 1.000000e+00 : f32
    %2 = vector.broadcast %cst : f32 to vector<2x128xf32>
    %3 = arith.addf %1, %2 : vector<2x128xf32>
    %c0_3 = arith.constant 0 : index
    %c0_4 = arith.constant 0 : index
    %c0_5 = arith.constant 0 : index
    %c0_6 = arith.constant 0 : index
    %4 = vector.load %arg5[%c0_3, %c0_4, %c0_5, %c0_6] : memref<1x3x2x128xf32, #tpu.memory_space<vmem>>, vector<1x1x2x128xf32>
    %5 = vector.shape_cast %4 : vector<1x1x2x128xf32> to vector<2x128xf32>
    %cst_7 = arith.constant 1.000000e+00 : f32
    %6 = vector.broadcast %cst_7 : f32 to vector<2x128xf32>
    %7 = arith.addf %5, %6 : vector<2x128xf32>
    %8 = arith.mulf %3, %7 : vector<2x128xf32>
    %c0_8 = arith.constant 0 : index
    %c1 = arith.constant 1 : index
    %c0_9 = arith.constant 0 : index
    %c0_10 = arith.constant 0 : index
    %9 = vector.load %arg4[%c0_8, %c1, %c0_9, %c0_10] : memref<1x3x2x128xf32, #tpu.memory_space<vmem>>, vector<1x1x2x128xf32>
    %10 = vector.shape_cast %9 : vector<1x1x2x128xf32> to vector<2x128xf32>
    %cst_11 = arith.constant 1.000000e+00 : f32
    %11 = vector.broadcast %cst_11 : f32 to vector<2x128xf32>
    %12 = arith.addf %10, %11 : vector<2x128xf32>
    %c0_12 = arith.constant 0 : index
    %c1_13 = arith.constant 1 : index
    %c0_14 = arith.constant 0 : index
    %c0_15 = arith.constant 0 : index
    %13 = vector.load %arg5[%c0_12, %c1_13, %c0_14, %c0_15] : memref<1x3x2x128xf32, #tpu.memory_space<vmem>>, vector<1x1x2x128xf32>
    %14 = vector.shape_cast %13 : vector<1x1x2x128xf32> to vector<2x128xf32>
    %cst_16 = arith.constant 1.000000e+00 : f32
    %15 = vector.broadcast %cst_16 : f32 to vector<2x128xf32>
    %16 = arith.addf %14, %15 : vector<2x128xf32>
    %17 = arith.mulf %12, %16 : vector<2x128xf32>
    %c0_17 = arith.constant 0 : index
    %c2 = arith.constant 2 : index
    %c0_18 = arith.constant 0 : index
    %c0_19 = arith.constant 0 : index
    %18 = vector.load %arg4[%c0_17, %c2, %c0_18, %c0_19] : memref<1x3x2x128xf32, #tpu.memory_space<vmem>>, vector<1x1x2x128xf32>
    %19 = vector.shape_cast %18 : vector<1x1x2x128xf32> to vector<2x128xf32>
    %cst_20 = arith.constant 1.000000e+00 : f32
    %20 = vector.broadcast %cst_20 : f32 to vector<2x128xf32>
    %21 = arith.addf %19, %20 : vector<2x128xf32>
    %c0_21 = arith.constant 0 : index
    %c2_22 = arith.constant 2 : index
    %c0_23 = arith.constant 0 : index
    %c0_24 = arith.constant 0 : index
    %22 = vector.load %arg5[%c0_21, %c2_22, %c0_23, %c0_24] : memref<1x3x2x128xf32, #tpu.memory_space<vmem>>, vector<1x1x2x128xf32>
    %23 = vector.shape_cast %22 : vector<1x1x2x128xf32> to vector<2x128xf32>
    %cst_25 = arith.constant 1.000000e+00 : f32
    %24 = vector.broadcast %cst_25 : f32 to vector<2x128xf32>
    %25 = arith.addf %23, %24 : vector<2x128xf32>
    %26 = arith.mulf %21, %25 : vector<2x128xf32>
    %c0_26 = arith.constant 0 : index
    %c0_27 = arith.constant 0 : index
    %27 = memref.load %arg2[%c0_26, %c0_27] : memref<3x3xf32, #tpu.memory_space<smem>>
    %28 = vector.broadcast %27 : f32 to vector<2x128xf32>
    %29 = arith.mulf %28, %8 : vector<2x128xf32>
    %c0_28 = arith.constant 0 : index
    %c1_29 = arith.constant 1 : index
    %30 = memref.load %arg2[%c0_28, %c1_29] : memref<3x3xf32, #tpu.memory_space<smem>>
    %31 = vector.broadcast %30 : f32 to vector<2x128xf32>
    %32 = arith.mulf %31, %17 : vector<2x128xf32>
    %33 = arith.addf %29, %32 : vector<2x128xf32>
    %c0_30 = arith.constant 0 : index
    %c2_31 = arith.constant 2 : index
    %34 = memref.load %arg2[%c0_30, %c2_31] : memref<3x3xf32, #tpu.memory_space<smem>>
    %35 = vector.broadcast %34 : f32 to vector<2x128xf32>
    %36 = arith.mulf %35, %26 : vector<2x128xf32>
    %37 = arith.addf %33, %36 : vector<2x128xf32>
    %c0_32 = arith.constant 0 : index
    %38 = memref.load %arg3[%c0_32] : memref<3xf32, #tpu.memory_space<smem>>
    %39 = vector.broadcast %38 : f32 to vector<2x128xf32>
    %40 = arith.addf %37, %39 : vector<2x128xf32>
    %c0_33 = arith.constant 0 : index
    %c0_34 = arith.constant 0 : index
    %c0_35 = arith.constant 0 : index
    %c0_36 = arith.constant 0 : index
    %41 = vector.load %arg6[%c0_33, %c0_34, %c0_35, %c0_36] : memref<1x3x2x128xf32, #tpu.memory_space<vmem>>, vector<1x1x2x128xf32>
    %42 = vector.shape_cast %41 : vector<1x1x2x128xf32> to vector<2x128xf32>
    %43 = vector.shape_cast %40 : vector<2x128xf32> to vector<1x1x2x128xf32>
    tpu.vector_store %arg6[%c0_33, %c0_34, %c0_35, %c0_36], %43 {strides = array<i32>} : memref<1x3x2x128xf32, #tpu.memory_space<vmem>>, vector<1x1x2x128xf32>,
    %c1_37 = arith.constant 1 : index
    %c0_38 = arith.constant 0 : index
    %44 = memref.load %arg2[%c1_37, %c0_38] : memref<3x3xf32, #tpu.memory_space<smem>>
    %45 = vector.broadcast %44 : f32 to vector<2x128xf32>
    %46 = arith.mulf %45, %8 : vector<2x128xf32>
    %c1_39 = arith.constant 1 : index
    %c1_40 = arith.constant 1 : index
    %47 = memref.load %arg2[%c1_39, %c1_40] : memref<3x3xf32, #tpu.memory_space<smem>>
    %48 = vector.broadcast %47 : f32 to vector<2x128xf32>
    %49 = arith.mulf %48, %17 : vector<2x128xf32>
    %50 = arith.addf %46, %49 : vector<2x128xf32>
    %c1_41 = arith.constant 1 : index
    %c2_42 = arith.constant 2 : index
    %51 = memref.load %arg2[%c1_41, %c2_42] : memref<3x3xf32, #tpu.memory_space<smem>>
    %52 = vector.broadcast %51 : f32 to vector<2x128xf32>
    %53 = arith.mulf %52, %26 : vector<2x128xf32>
    %54 = arith.addf %50, %53 : vector<2x128xf32>
    %c1_43 = arith.constant 1 : index
    %55 = memref.load %arg3[%c1_43] : memref<3xf32, #tpu.memory_space<smem>>
    %56 = vector.broadcast %55 : f32 to vector<2x128xf32>
    %57 = arith.addf %54, %56 : vector<2x128xf32>
    %c0_44 = arith.constant 0 : index
    %c1_45 = arith.constant 1 : index
    %c0_46 = arith.constant 0 : index
    %c0_47 = arith.constant 0 : index
    %58 = vector.load %arg6[%c0_44, %c1_45, %c0_46, %c0_47] : memref<1x3x2x128xf32, #tpu.memory_space<vmem>>, vector<1x1x2x128xf32>
    %59 = vector.shape_cast %58 : vector<1x1x2x128xf32> to vector<2x128xf32>
    %60 = vector.shape_cast %57 : vector<2x128xf32> to vector<1x1x2x128xf32>
    tpu.vector_store %arg6[%c0_44, %c1_45, %c0_46, %c0_47], %60 {strides = array<i32>} : memref<1x3x2x128xf32, #tpu.memory_space<vmem>>, vector<1x1x2x128xf32>,
    %c2_48 = arith.constant 2 : index
    %c0_49 = arith.constant 0 : index
    %61 = memref.load %arg2[%c2_48, %c0_49] : memref<3x3xf32, #tpu.memory_space<smem>>
    %62 = vector.broadcast %61 : f32 to vector<2x128xf32>
    %63 = arith.mulf %62, %8 : vector<2x128xf32>
    %c2_50 = arith.constant 2 : index
    %c1_51 = arith.constant 1 : index
    %64 = memref.load %arg2[%c2_50, %c1_51] : memref<3x3xf32, #tpu.memory_space<smem>>
    %65 = vector.broadcast %64 : f32 to vector<2x128xf32>
    %66 = arith.mulf %65, %17 : vector<2x128xf32>
    %67 = arith.addf %63, %66 : vector<2x128xf32>
    %c2_52 = arith.constant 2 : index
    %c2_53 = arith.constant 2 : index
    %68 = memref.load %arg2[%c2_52, %c2_53] : memref<3x3xf32, #tpu.memory_space<smem>>
    %69 = vector.broadcast %68 : f32 to vector<2x128xf32>
    %70 = arith.mulf %69, %26 : vector<2x128xf32>
    %71 = arith.addf %67, %70 : vector<2x128xf32>
    %c2_54 = arith.constant 2 : index
    %72 = memref.load %arg3[%c2_54] : memref<3xf32, #tpu.memory_space<smem>>
    %73 = vector.broadcast %72 : f32 to vector<2x128xf32>
    %74 = arith.addf %71, %73 : vector<2x128xf32>
    %c0_55 = arith.constant 0 : index
    %c2_56 = arith.constant 2 : index
    %c0_57 = arith.constant 0 : index
    %c0_58 = arith.constant 0 : index
    %75 = vector.load %arg6[%c0_55, %c2_56, %c0_57, %c0_58] : memref<1x3x2x128xf32, #tpu.memory_space<vmem>>, vector<1x1x2x128xf32>
    %76 = vector.shape_cast %75 : vector<1x1x2x128xf32> to vector<2x128xf32>
    %77 = vector.shape_cast %74 : vector<2x128xf32> to vector<1x1x2x128xf32>
    tpu.vector_store %arg6[%c0_55, %c2_56, %c0_57, %c0_58], %77 {strides = array<i32>} : memref<1x3x2x128xf32, #tpu.memory_space<vmem>>, vector<1x1x2x128xf32>,
    return
  }
  func.func @transform_0(%arg0: i32, %arg1: i32) -> (i32, i32) {
    %c0_i32 = arith.constant 0 : i32
    %c0_i32_0 = arith.constant 0 : i32
    %c0_i32_1 = arith.constant 0 : i32
    return %c0_i32, %c0_i32_0 : i32, i32
  }
  func.func @transform_1(%arg0: i32, %arg1: i32) -> i32 {
    %c0_i32 = arith.constant 0 : i32
    %c0_i32_0 = arith.constant 0 : i32
    return %c0_i32 : i32
  }
  func.func @transform_2(%arg0: i32, %arg1: i32) -> (i32, i32, i32, i32) {
    %c0_i32 = arith.constant 0 : i32
    %c0_i32_0 = arith.constant 0 : i32
    %c0_i32_1 = arith.constant 0 : i32
    return %arg0, %c0_i32, %arg1, %c0_i32_0 : i32, i32, i32, i32
  }
  func.func @transform_3(%arg0: i32, %arg1: i32) -> (i32, i32, i32, i32) {
    %c0_i32 = arith.constant 0 : i32
    %c0_i32_0 = arith.constant 0 : i32
    %c0_i32_1 = arith.constant 0 : i32
    return %arg0, %c0_i32, %arg1, %c0_i32_0 : i32, i32, i32, i32
  }
  func.func @transform_4(%arg0: i32, %arg1: i32) -> (i32, i32, i32, i32) {
    %c0_i32 = arith.constant 0 : i32
    %c0_i32_0 = arith.constant 0 : i32
    %c0_i32_1 = arith.constant 0 : i32
    return %arg0, %c0_i32, %arg1, %c0_i32_0 : i32, i32, i32, i32
  }
}

</mosaic_0001>

<llo_original>
// kernel: tpu_custom_call.1
$region0: #{tpu_custom_call.1}
  #allocation0 [shape = 'u32[]', space=smem, size = 0x4, offset = 0x4, fixed_abs, tag = 'smem constant byte address 0x4 - core index']
  #allocation1 [shape = 'u32[144,128]{1,0:T(1,128)}', space=vmem, size = 0x12000, scoped, tag = 'internal scratch']
  %s0 = inlined_call_operand.hbm [shape: f32[3,3], index: 0, kind: input, shape index: {}]
  %s1 = inlined_call_operand.vmem [shape: f32[3], index: 1, kind: input, shape index: {}]
  %s2 = inlined_call_operand.hbm [shape: f32[2,3,2,128], index: 2, kind: input, shape index: {}]
  %s3 = inlined_call_operand.hbm [shape: f32[2,3,2,128], index: 3, kind: input, shape index: {}]
  %s4 = inlined_call_operand.hbm [shape: f32[2,3,2,128], index: 4, kind: output, shape index: {}]
  %s5 = sld [smem:[#allocation0]]
  $region65: #{tpu_custom_call.1} parent=0
    _
  %s7 = ssub.s32 1, %s5
  %s8 = scalar_select 0, %s7, %s5
  $region1: #{tpu_custom_call.1} parent=0
    #allocation2 [shape = 'u8[2048]{0}', space=smem, size = 0x800, scoped, tag = 'input window, operand 0, single buffered']
    #allocation3 [shape = 's32[2]{0}', space=sflag, size = 0x8, scoped, tag = 'scoped memory for tpu_custom_call.1']
    #allocation4 [shape = 's32[2]{0}', space=sflag, size = 0x8, scoped, tag = 'scoped memory for tpu_custom_call.1']
    #allocation5 [shape = 's32[2]{0}', space=sflag, size = 0x8, scoped, tag = 'scoped memory for tpu_custom_call.1']
    #allocation6 [shape = 's32[2]{0}', space=sflag, size = 0x8, scoped, tag = 'scoped memory for tpu_custom_call.1']
    #allocation7 [shape = 'u8[512]{0}', space=smem, size = 0x200, scoped, tag = 'input window, operand 1, single buffered']
    #allocation8 [shape = 'u8[6144]{0}', space=vmem, size = 0x1800, scoped, tag = 'input window, operand 2']
    #allocation9 [shape = 'u8[6144]{0}', space=vmem, size = 0x1800, scoped, tag = 'input window, operand 3']
    #allocation10 [shape = 's32[2]{0}', space=sflag, size = 0x8, scoped, tag = 'scoped memory for tpu_custom_call.1']
    #allocation11 [shape = 'u8[6144]{0}', space=vmem, size = 0x1800, scoped, tag = 'output window, operand 0']
    %9 = vsyncpa [#allocation5], 0
    %10 = vsyncpa [#allocation6], 0
    %11 = vsyncpa [#allocation3], 0
    %s12 = scalar_lea.sflag [#allocation3], 1
    %13 = vsyncpa %s12, 0
    %14 = vsyncpa [#allocation10], 0
    %s15 = scalar_lea.sflag [#allocation10], 1
    %16 = vsyncpa %s15, 0
    %17 = vsyncpa [#allocation4], 0
    %s18 = scalar_lea.sflag [#allocation4], 1
    %19 = vsyncpa %s18, 0
    loop: start=0, step=1, limit=4
    $region2: #{tpu_custom_call.1} parent=1 // loop_pre_header
      _
    $region3: #{tpu_custom_call.1} parent=1 // loop_header
      %s21 = sphi 0, %s25
      %p22 = scmp.ge.s32.totalorder %s21, 4
      %s28 = sphi 0, %s40
      %s29 = sphi 0, %s36
      %s30 = sphi 0, %s28
      %s31 = sphi 0, %s29
      %s32 = sphi 0, %s30
      %s33 = sphi 0, %s31
      %s41 = sphi 0, %s41
      %s43 = sphi 0, %s41
      %s44 = sphi 0, %s43
      %s58 = sphi 0, %s44
      %s62 = sphi 0, %s62
      %s64 = sphi 0, %s62
      %s65 = sphi 0, %s64
      %s79 = sphi 0, %s65
      %s87 = sphi 0, %s89
      %s90 = sphi 0, %s87
      %s91 = sphi 0, %s90
      %s107 = sphi 0, %s91
      %s115 = sphi 0, %s117
      %s118 = sphi 0, %s115
      %s119 = sphi 0, %s118
      %s135 = sphi 0, %s119
      %s143 = sphi 0, %s145
      %s146 = sphi 0, %s143
      %s147 = sphi 0, %s146
      %s163 = sphi 0, %s147
    $region4: #{tpu_custom_call.1} parent=1 // loop_header_branch
      %24 = sbr.rel (%p22) target = $region8
    $region5: #{tpu_custom_call.1} parent=1 // loop_body
      %s26 = ssub.s32 %s21, 1
      %s27 = ssub.s32 %s21, 2
      %s34 = sadd.s32 1, %s29
      %p35 = scmp.ge.s32.totalorder %s34, 1
      %s36 = scalar_select %p35, 0, %s34
      %s37 = sadd.s32 1, %s28
      %s38 = scalar_select %p35, %s37, %s28
      %p39 = scmp.ge.s32.totalorder %s38, 2
      %s40 = scalar_select %p39, 0, %s38
      %s42 = sadd.s32 %s41, 1
      %p45 = scmp.eq.s32.totalorder %s21, 1
      %p46 = scmp.ne.s32.totalorder %s41, %s43
      %p47 = scmp.eq.s32.totalorder %s21, 0
      %p48 = por %p46, %p47
      %p49 = scmp.ne.s32.totalorder %s41, %s43
      %p50 = scmp.eq.s32.totalorder %s26, 1
      %p51 = por %p49, %p50
      %p52 = scmp.ne.s32.totalorder %s43, %s44
      %p53 = scmp.eq.s32.totalorder %s26, 0
      %p54 = por %p52, %p53
      %p55 = scmp.ne.s32.totalorder %s43, %s44
      %p56 = scmp.eq.s32.totalorder %s27, 1
      %p57 = por %p55, %p56
      %p59 = scmp.ne.s32.totalorder %s44, %s58
      %p60 = scmp.eq.s32.totalorder %s27, 0
      %p61 = por %p59, %p60
      %s63 = sadd.s32 %s62, 1
      %p66 = scmp.eq.s32.totalorder %s21, 1
      %p67 = scmp.ne.s32.totalorder %s62, %s64
      %p68 = scmp.eq.s32.totalorder %s21, 0
      %p69 = por %p67, %p68
      %p70 = scmp.ne.s32.totalorder %s62, %s64
      %p71 = scmp.eq.s32.totalorder %s26, 1
      %p72 = por %p70, %p71
      %p73 = scmp.ne.s32.totalorder %s64, %s65
      %p74 = scmp.eq.s32.totalorder %s26, 0
      %p75 = por %p73, %p74
      %p76 = scmp.ne.s32.totalorder %s64, %s65
      %p77 = scmp.eq.s32.totalorder %s27, 1
      %p78 = por %p76, %p77
      %p80 = scmp.ne.s32.totalorder %s65, %s79
      %p81 = scmp.eq.s32.totalorder %s27, 0
      %p82 = por %p80, %p81
      %s83 = ssub.s32 %s28, %s40
      %s84 = ssub.s32 %s29, %s36
      %s85 = sor.u32 %s83, %s84
      %p86 = scmp.eq.s32.totalorder %s85, 0
      %s88 = sadd.s32 %s87, 1
      %s89 = scalar_select %p86, %s87, %s88
      %p92 = pneg %p86
      %p93 = scmp.eq.s32.totalorder %s21, 1
      %p94 = por %p92, %p93
      %p95 = scmp.ne.s32.totalorder %s87, %s90
      %p96 = scmp.eq.s32.totalorder %s21, 0
      %p97 = por %p95, %p96
      %p98 = scmp.ne.s32.totalorder %s87, %s90
      %p99 = scmp.eq.s32.totalorder %s26, 1
      %p100 = por %p98, %p99
      %p101 = scmp.ne.s32.totalorder %s90, %s91
      %p102 = scmp.eq.s32.totalorder %s26, 0
      %p103 = por %p101, %p102
      %p104 = scmp.ne.s32.totalorder %s90, %s91
      %p105 = scmp.eq.s32.totalorder %s27, 1
      %p106 = por %p104, %p105
      %p108 = scmp.ne.s32.totalorder %s91, %s107
      %p109 = scmp.eq.s32.totalorder %s27, 0
      %p110 = por %p108, %p109
      %s111 = ssub.s32 %s28, %s40
      %s112 = ssub.s32 %s29, %s36
      %s113 = sor.u32 %s111, %s112
      %p114 = scmp.eq.s32.totalorder %s113, 0
      %s116 = sadd.s32 %s115, 1
      %s117 = scalar_select %p114, %s115, %s116
      %p120 = pneg %p114
      %p121 = scmp.eq.s32.totalorder %s21, 1
      %p122 = por %p120, %p121
      %p123 = scmp.ne.s32.totalorder %s115, %s118
      %p124 = scmp.eq.s32.totalorder %s21, 0
      %p125 = por %p123, %p124
      %p126 = scmp.ne.s32.totalorder %s115, %s118
      %p127 = scmp.eq.s32.totalorder %s26, 1
      %p128 = por %p126, %p127
      %p129 = scmp.ne.s32.totalorder %s118, %s119
      %p130 = scmp.eq.s32.totalorder %s26, 0
      %p131 = por %p129, %p130
      %p132 = scmp.ne.s32.totalorder %s118, %s119
      %p133 = scmp.eq.s32.totalorder %s27, 1
      %p134 = por %p132, %p133
      %p136 = scmp.ne.s32.totalorder %s119, %s135
      %p137 = scmp.eq.s32.totalorder %s27, 0
      %p138 = por %p136, %p137
      %s139 = ssub.s32 %s28, %s40
      %s140 = ssub.s32 %s29, %s36
      %s141 = sor.u32 %s139, %s140
      %p142 = scmp.eq.s32.totalorder %s141, 0
      %s144 = sadd.s32 %s143, 1
      %s145 = scalar_select %p142, %s143, %s144
      %p148 = pneg %p142
      %p149 = scmp.eq.s32.totalorder %s21, 1
      %p150 = por %p148, %p149
      %p151 = scmp.ne.s32.totalorder %s143, %s146
      %p152 = scmp.eq.s32.totalorder %s21, 0
      %p153 = por %p151, %p152
      %p154 = scmp.ne.s32.totalorder %s143, %s146
      %p155 = scmp.eq.s32.totalorder %s26, 1
      %p156 = por %p154, %p155
      %p157 = scmp.ne.s32.totalorder %s146, %s147
      %p158 = scmp.eq.s32.totalorder %s26, 0
      %p159 = por %p157, %p158
      %p160 = scmp.ne.s32.totalorder %s146, %s147
      %p161 = scmp.eq.s32.totalorder %s27, 1
      %p162 = por %p160, %p161
      %p164 = scmp.ne.s32.totalorder %s147, %s163
      %p165 = scmp.eq.s32.totalorder %s27, 0
      %p166 = por %p164, %p165
      %p167 = scmp.le.s32.totalorder 1, %s21
      %p168 = scmp.lt.s32.totalorder %s21, 3
      %p169 = pnand %p167, %p168
      %p170 = pneg %p169
      // Predicated region
      $region9: #{tpu_custom_call.1} parent=5 // pred_check
        _
      $region10: #{tpu_custom_call.1} parent=5 // pred_check_branch
        %172 = sbr.rel (%p169) target = $region12
      $region11: #{tpu_custom_call.1} parent=5 // pred_region
        %s173 = ssub.s32 %s21, 1
        // Predicated region
        $region13: #{tpu_custom_call.1} parent=11 // pred_check
          %p174 = pneg %p54
        $region14: #{tpu_custom_call.1} parent=11 // pred_check_branch
          %176 = sbr.rel (%p174) target = $region16
        $region15: #{tpu_custom_call.1} parent=11 // pred_region
          %s178 = ssub.s32 64, 64
          %179 = vsyncadd [#allocation5], %s178
          %182 = dma.hbm_to_smem %s0, 64, [#allocation2], [#allocation5]
        $region16: #{tpu_custom_call.1} parent=11 // pred_fallthru
          _
        // Predicated region
        $region17: #{tpu_custom_call.1} parent=11 // pred_check
          %p183 = pneg %p75
        $region18: #{tpu_custom_call.1} parent=11 // pred_check_branch
          %185 = sbr.rel (%p183) target = $region20
        $region19: #{tpu_custom_call.1} parent=11 // pred_region
          %s187 = ssub.s32 16, 16
          %188 = vsyncadd [#allocation6], %s187
          %s190 = sshll.u32 %s1, 4
          %s191 = int_to_ptr.vmem [resolvable:$true] %s190
          %193 = dma.vmem_to_smem %s191, 16, [#allocation7], [#allocation6]
        $region20: #{tpu_custom_call.1} parent=11 // pred_fallthru
          _
      $region12: #{tpu_custom_call.1} parent=5 // pred_fallthru
        _
      %p194 = scmp.lt.s32.totalorder %s21, 2
      // Predicated region
      $region21: #{tpu_custom_call.1} parent=5 // pred_check
        %p195 = pneg %p194
      $region22: #{tpu_custom_call.1} parent=5 // pred_check_branch
        %197 = sbr.rel (%p195) target = $region24
      $region23: #{tpu_custom_call.1} parent=5 // pred_region
        // Predicated region
        $region25: #{tpu_custom_call.1} parent=23 // pred_check
          %p198 = pneg %p97
        $region26: #{tpu_custom_call.1} parent=23 // pred_check_branch
          %200 = sbr.rel (%p198) target = $region28
        $region27: #{tpu_custom_call.1} parent=23 // pred_region
          %s201 = sand.u32 %s87, 1
          %s202 = scalar_lea.sflag [#allocation3], %s201
          %s203 = sand.u32 %s87, 1
          %s204 = smul.addr %s203, 6
          %s205 = scalar_lea.vmem [#allocation8], %s204
          %s207 = ssub.s32 96, 96
          %208 = vsyncadd %s202, %s207
          %s209 = smul.addr %s28, 3
          %s210 = sadd.s32 %s29, %s209
          %s211 = smul.addr %s210, 32
          %s212 = scalar_lea.hbm %s2, %s211
          %s213 = sshll.u32 %s205, 4
          %s214 = int_to_ptr.vmem [resolvable:$true] %s213
          %219 = dma.hbm_to_vmem [thread:$0]  %s212, 96, %s214, %s202, 32, 32, 2
        $region28: #{tpu_custom_call.1} parent=23 // pred_fallthru
          _
        // Predicated region
        $region29: #{tpu_custom_call.1} parent=23 // pred_check
          %p220 = pneg %p125
        $region30: #{tpu_custom_call.1} parent=23 // pred_check_branch
          %222 = sbr.rel (%p220) target = $region32
        $region31: #{tpu_custom_call.1} parent=23 // pred_region
          %s223 = sand.u32 %s115, 1
          %s224 = scalar_lea.sflag [#allocation10], %s223
          %s225 = sand.u32 %s115, 1
          %s226 = smul.addr %s225, 6
          %s227 = scalar_lea.vmem [#allocation9], %s226
          %s229 = ssub.s32 96, 96
          %230 = vsyncadd %s224, %s229
          %s231 = smul.addr %s28, 3
          %s232 = sadd.s32 %s29, %s231
          %s233 = smul.addr %s232, 32
          %s234 = scalar_lea.hbm %s3, %s233
          %s235 = sshll.u32 %s227, 4
          %s236 = int_to_ptr.vmem [resolvable:$true] %s235
          %241 = dma.hbm_to_vmem [thread:$0]  %s234, 96, %s236, %s224, 32, 32, 2
        $region32: #{tpu_custom_call.1} parent=23 // pred_fallthru
          _
      $region24: #{tpu_custom_call.1} parent=5 // pred_fallthru
        _
      %p242 = scmp.le.s32.totalorder 1, %s21
      %p243 = scmp.lt.s32.totalorder %s21, 3
      %p244 = pnand %p242, %p243
      %p245 = pneg %p244
      // Predicated region
      $region33: #{tpu_custom_call.1} parent=5 // pred_check
        _
      $region34: #{tpu_custom_call.1} parent=5 // pred_check_branch
        %247 = sbr.rel (%p244) target = $region36
      $region35: #{tpu_custom_call.1} parent=5 // pred_region
        %s248 = ssub.s32 %s21, 1
        // Predicated region
        $region37: #{tpu_custom_call.1} parent=35 // pred_check
          %p249 = pneg %p54
        $region38: #{tpu_custom_call.1} parent=35 // pred_check_branch
          %251 = sbr.rel (%p249) target = $region40
        $region39: #{tpu_custom_call.1} parent=35 // pred_region
          %252 = dma.done [#allocation5], 64
        $region40: #{tpu_custom_call.1} parent=35 // pred_fallthru
          _
        // Predicated region
        $region41: #{tpu_custom_call.1} parent=35 // pred_check
          %p253 = pneg %p75
        $region42: #{tpu_custom_call.1} parent=35 // pred_check_branch
          %255 = sbr.rel (%p253) target = $region44
        $region43: #{tpu_custom_call.1} parent=35 // pred_region
          %256 = dma.done [#allocation6], 16
        $region44: #{tpu_custom_call.1} parent=35 // pred_fallthru
          _
        %s257 = sand.u32 %s90, 1
        %s258 = scalar_lea.sflag [#allocation3], %s257
        %s259 = sand.u32 %s90, 1
        %s260 = smul.addr %s259, 6
        %s261 = scalar_lea.vmem [#allocation8], %s260
        // Predicated region
        $region45: #{tpu_custom_call.1} parent=35 // pred_check
          %p262 = pneg %p103
        $region46: #{tpu_custom_call.1} parent=35 // pred_check_branch
          %264 = sbr.rel (%p262) target = $region48
        $region47: #{tpu_custom_call.1} parent=35 // pred_region
          %265 = dma.done %s258, 96
        $region48: #{tpu_custom_call.1} parent=35 // pred_fallthru
          _
        %s266 = sand.u32 %s118, 1
        %s267 = scalar_lea.sflag [#allocation10], %s266
        %s268 = sand.u32 %s118, 1
        %s269 = smul.addr %s268, 6
        %s270 = scalar_lea.vmem [#allocation9], %s269
        // Predicated region
        $region49: #{tpu_custom_call.1} parent=35 // pred_check
          %p271 = pneg %p131
        $region50: #{tpu_custom_call.1} parent=35 // pred_check_branch
          %273 = sbr.rel (%p271) target = $region52
        $region51: #{tpu_custom_call.1} parent=35 // pred_region
          %274 = dma.done %s267, 96
        $region52: #{tpu_custom_call.1} parent=35 // pred_fallthru
          _
        %275 = sfence
        %p276 = pneg %p54
        %p277 = pneg %p51
        %p278 = pneg %p75
        %p279 = pneg %p72
        %s280 = sand.u32 %s90, 1
        %s281 = scalar_lea.sflag [#allocation3], %s280
        %s282 = sand.u32 %s90, 1
        %s283 = smul.addr %s282, 6
        %s284 = scalar_lea.vmem [#allocation8], %s283
        %p285 = pneg %p103
        %p286 = pneg %p100
        %s287 = sand.u32 %s118, 1
        %s288 = scalar_lea.sflag [#allocation10], %s287
        %s289 = sand.u32 %s118, 1
        %s290 = smul.addr %s289, 6
        %s291 = scalar_lea.vmem [#allocation9], %s290
        %p292 = pneg %p131
        %p293 = pneg %p128
        %p294 = pneg %p159
        %p295 = pneg %p156
        %s296 = sand.u32 %s146, 1
        %s297 = scalar_lea.sflag [#allocation4], %s296
        %s298 = sand.u32 %s146, 1
        %s299 = smul.addr %s298, 6
        %s300 = scalar_lea.vmem [#allocation11], %s299
        %v301 = vld [vmem:[%s261] sm:$0x3]
        %v302 = vadd.f32 %v301, 1.0
        %v303 = vld [vmem:[%s270] sm:$0x3]
        %v304 = vadd.f32 %v303, 1.0
        %v305 = vmul.f32 %v302, %v304
        %s306 = scalar_lea.vmem %s261, 2 [#allocation8]
        %v307 = vld [vmem:[%s306] sm:$0x3]
        %v308 = vadd.f32 %v307, 1.0
        %s309 = scalar_lea.vmem %s270, 2 [#allocation9]
        %v310 = vld [vmem:[%s309] sm:$0x3]
        %v311 = vadd.f32 %v310, 1.0
        %v312 = vmul.f32 %v308, %v311
        %s313 = scalar_lea.vmem %s261, 4 [#allocation8]
        %v314 = vld [vmem:[%s313] sm:$0x3]
        %v315 = vadd.f32 %v314, 1.0
        %s316 = scalar_lea.vmem %s270, 4 [#allocation9]
        %v317 = vld [vmem:[%s316] sm:$0x3]
        %v318 = vadd.f32 %v317, 1.0
        %v319 = vmul.f32 %v315, %v318
        %s320 = sld [smem:[#allocation2]]
        %v321 = vstv %s320
        %v322 = vmul.f32 %v321, %v305
        %s323 = sld [smem:[#allocation2 + $0x1]]
        %v324 = vstv %s323
        %v325 = vmul.f32 %v324, %v312
        %v326 = vadd.f32 %v322, %v325
        %s327 = sld [smem:[#allocation2 + $0x2]]
        %v328 = vstv %s327
        %v329 = vmul.f32 %v328, %v319
        %v330 = vadd.f32 %v326, %v329
        %s331 = sld [smem:[#allocation7]]
        %v332 = vstv %s331
        %v333 = vadd.f32 %v330, %v332
        %334 = vst [vmem:[%s300] sm:$0x3] %v333
        %s335 = sld [smem:[#allocation2 + $0x80]]
        %v336 = vstv %s335
        %v337 = vmul.f32 %v336, %v305
        %s338 = sld [smem:[#allocation2 + $0x81]]
        %v339 = vstv %s338
        %v340 = vmul.f32 %v339, %v312
        %v341 = vadd.f32 %v337, %v340
        %s342 = sld [smem:[#allocation2 + $0x82]]
        %v343 = vstv %s342
        %v344 = vmul.f32 %v343, %v319
        %v345 = vadd.f32 %v341, %v344
        %s346 = sld [smem:[#allocation7 + $0x1]]
        %v347 = vstv %s346
        %v348 = vadd.f32 %v345, %v347
        %s349 = scalar_lea.vmem %s300, 2 [#allocation11]
        %350 = vst [vmem:[%s349] sm:$0x3] %v348
        %s351 = sld [smem:[#allocation2 + $0x100]]
        %v352 = vstv %s351
        %v353 = vmul.f32 %v352, %v305
        %s354 = sld [smem:[#allocation2 + $0x101]]
        %v355 = vstv %s354
        %v356 = vmul.f32 %v355, %v312
        %v357 = vadd.f32 %v353, %v356
        %s358 = sld [smem:[#allocation2 + $0x102]]
        %v359 = vstv %s358
        %v360 = vmul.f32 %v359, %v319
        %v361 = vadd.f32 %v357, %v360
        %s362 = sld [smem:[#allocation7 + $0x2]]
        %v363 = vstv %s362
        %v364 = vadd.f32 %v361, %v363
        %s365 = scalar_lea.vmem %s300, 4 [#allocation11]
        %366 = vst [vmem:[%s365] sm:$0x3] %v364
        %s367 = sand.u32 %s146, 1
        %s368 = scalar_lea.sflag [#allocation4], %s367
        %s369 = sand.u32 %s146, 1
        %s370 = smul.addr %s369, 6
        %s371 = scalar_lea.vmem [#allocation11], %s370
        // Predicated region
        $region53: #{tpu_custom_call.1} parent=35 // pred_check
          %p372 = pneg %p156
        $region54: #{tpu_custom_call.1} parent=35 // pred_check_branch
          %374 = sbr.rel (%p372) target = $region56
        $region55: #{tpu_custom_call.1} parent=35 // pred_region
          %s376 = ssub.s32 96, 96
          %377 = vsyncadd %s368, %s376
          %s378 = smul.addr %s30, 3
          %s379 = sadd.s32 %s31, %s378
          %s380 = smul.addr %s379, 32
          %s381 = scalar_lea.hbm %s4, %s380
          %s382 = sshll.u32 %s371, 4
          %s383 = int_to_ptr.vmem [resolvable:$true] %s382
          %388 = dma.vmem_to_hbm [thread:$0]  %s383, 96, %s381, %s368, 32, 32, 2
        $region56: #{tpu_custom_call.1} parent=35 // pred_fallthru
          _
      $region36: #{tpu_custom_call.1} parent=5 // pred_fallthru
        _
      %p389 = scmp.le.s32.totalorder 2, %s21
      // Predicated region
      $region57: #{tpu_custom_call.1} parent=5 // pred_check
        %p390 = pneg %p389
      $region58: #{tpu_custom_call.1} parent=5 // pred_check_branch
        %392 = sbr.rel (%p390) target = $region60
      $region59: #{tpu_custom_call.1} parent=5 // pred_region
        %s393 = ssub.s32 %s21, 2
        // Predicated region
        $region61: #{tpu_custom_call.1} parent=59 // pred_check
          %p394 = pneg %p162
        $region62: #{tpu_custom_call.1} parent=59 // pred_check_branch
          %396 = sbr.rel (%p394) target = $region64
        $region63: #{tpu_custom_call.1} parent=59 // pred_region
          %s397 = sand.u32 %s147, 1
          %s398 = scalar_lea.sflag [#allocation4], %s397
          %s399 = sand.u32 %s147, 1
          %s400 = smul.addr %s399, 6
          %s401 = scalar_lea.vmem [#allocation11], %s400
          %402 = dma.done %s398, 96
        $region64: #{tpu_custom_call.1} parent=59 // pred_fallthru
          _
      $region60: #{tpu_custom_call.1} parent=5 // pred_fallthru
        _
    $region6: #{tpu_custom_call.1} parent=1 // loop_footer
      %s25 = sadd.s32 1, %s21
    $region7: #{tpu_custom_call.1} parent=1 // loop_footer_branch
      %20 = sbr.rel target = $region3
    $region8: #{tpu_custom_call.1} parent=1 // loop_exit
      _
    %403 = vsyncpa [#allocation3], 1
    %s404 = scalar_lea.sflag [#allocation3], 1
    %405 = vsyncpa %s404, 1
    %406 = vsyncpa [#allocation10], 1
    %s407 = scalar_lea.sflag [#allocation10], 1
    %408 = vsyncpa %s407, 1
    %409 = vsyncpa [#allocation4], 1
    %s410 = scalar_lea.sflag [#allocation4], 1
    %411 = vsyncpa %s410, 1
    %412 = vsyncpa [#allocation5], 1
    %s413 = scalar_lea.sflag [#allocation5], 1
    %414 = vsyncpa %s413, 1
    %415 = vsyncpa [#allocation6], 1
    %s416 = scalar_lea.sflag [#allocation6], 1
    %417 = vsyncpa %s416, 1

</llo_original>
